<compile_context>
chip_gen: v7x
topology: tpu7x:2x2x1
jax: 0.10.0
libtpu: 0.0.40
codegen_flags: <defaults>
</compile_context>

<pallas_src>
import functools
import math

import jax
import jax.numpy as jnp
from jax.experimental import pallas as pl
from jax.experimental.pallas import tpu as pltpu

LANE = 128
GRIDLESS_MAX_ROWS = 512  # keep the no-grid path VMEM footprint trivially bounded


def _round_up(n, m):
    return ((n + m - 1) // m) * m


def ddqn_mlp_kernel(x_ref, w1_ref, b1_ref, w2_ref, b2_ref, w3_ref, b3_ref,
                    q_ref, *, action_size):
    # In-kernel bf16 cast of x (VPU), bf16 MXU operands, f32 accumulate.
    x = x_ref[...].astype(w1_ref.dtype)

    # Layer 1: Linear(S, 128) + ReLU
    h1 = jnp.dot(x, w1_ref[...], preferred_element_type=jnp.float32)
    h1 = jnp.maximum(h1 + b1_ref[...], 0.0)
    # Layer 2: Linear(128, 64 -> padded 128) + ReLU
    h2 = jnp.dot(h1.astype(w2_ref.dtype), w2_ref[...],
                 preferred_element_type=jnp.float32)
    h2 = jnp.maximum(h2 + b2_ref[...], 0.0)
    # Layer 3: Linear(64 -> 128 padded, A -> 128 padded)
    q = jnp.dot(h2.astype(w3_ref.dtype), w3_ref[...],
                preferred_element_type=jnp.float32)
    q = q + b3_ref[...]

    # Fused greedy-action argmax over the real action columns (XLU slot is idle -> free).
    ap = q.shape[-1]
    col = jax.lax.broadcasted_iota(jnp.int32, q.shape, dimension=1)
    masked = jnp.where(col < action_size, q, -jnp.inf)
    qmax = jnp.max(masked, axis=-1, keepdims=True)
    idx = jnp.where(masked == qmax, col, ap)                 # sentinel = padded width
    act = jnp.min(idx, axis=-1, keepdims=True).astype(jnp.float32)  # ints < 128, exact in f32

    # Merge the argmax into the last (always padded, never a real action) lane of the
    # q slab -> a single unmasked lane-dense 128-wide f32 store.
    q_ref[...] = jnp.where(col == ap - 1, act, q)


def init_ddqn_params(key, state_size, action_size):
    """torch.nn.Linear default init: U(-1/sqrt(fan_in), 1/sqrt(fan_in)) for W and b.
    Weights stored [in, out] (transposed vs torch) so the kernel does x @ W + b."""
    dims = [(state_size, 128), (128, 64), (64, action_size)]
    params = []
    for fan_in, fan_out in dims:
        key, kw, kb = jax.random.split(key, 3)
        bound = 1.0 / math.sqrt(fan_in)
        w = jax.random.uniform(kw, (fan_in, fan_out), jnp.float32, -bound, bound)
        b = jax.random.uniform(kb, (1, fan_out), jnp.float32, -bound, bound)
        params.extend([w, b])
    return tuple(params)


def pack_params(params, compute_dtype=jnp.bfloat16):
    """One-time packing: zero-pad the 64- and A-wide dims to 128 lanes (always leaving at
    least one spare lane for the fused argmax) and cast MXU operands to bf16.
    Call once outside the RL step loop and reuse the result."""
    w1, b1, w2, b2, w3, b3 = params
    action_size = w3.shape[1]
    h2p = _round_up(w2.shape[1], LANE)              # 64  -> 128
    ap = _round_up(action_size + 1, LANE)           # A   -> 128 (>= A+1: spare argmax lane)
    w2p = jnp.zeros((w2.shape[0], h2p), jnp.float32).at[:, :w2.shape[1]].set(w2)
    b2p = jnp.zeros((1, h2p), jnp.float32).at[:, :b2.shape[1]].set(b2)
    w3p = jnp.zeros((h2p, ap), jnp.float32).at[:w3.shape[0], :action_size].set(w3)
    b3p = jnp.zeros((1, ap), jnp.float32).at[:, :action_size].set(b3)
    packed = (w1.astype(compute_dtype), b1.astype(jnp.float32),
              w2p.astype(compute_dtype), b2p.astype(jnp.float32),
              w3p.astype(compute_dtype), b3p.astype(jnp.float32))
    return packed, action_size


def ddqn_forward(x, packed_params, action_size):
    """x: [B, ...] -> flattened to [B, state_size] (nn.Flatten).
    Returns (q_values [B, action_size] f32, greedy_actions [B] int32)."""
    w1, b1, w2, b2, w3, b3 = packed_params
    ap = w3.shape[1]
    h2p = w2.shape[1]

    B = x.shape[0]
    x_flat = x.reshape(B, -1)            # nn.Flatten; no pad, no cast (done in-kernel)
    S = x_flat.shape[1]

    kernel = functools.partial(ddqn_mlp_kernel, action_size=action_size)
    out_shape = jax.ShapeDtypeStruct((B, ap), jnp.float32)

    flops = 2 * B * (S * 128 + 128 * h2p + h2p * ap)
    bytes_accessed = (int(x_flat.size) * x_flat.dtype.itemsize
                      + sum(int(p.size) * p.dtype.itemsize for p in packed_params)
                      + B * ap * 4)
    cost = pl.CostEstimate(flops=flops, transcendentals=0,
                           bytes_accessed=bytes_accessed)

    if B <= GRIDLESS_MAX_ROWS:
        # Small batch (per-step acting / small replay minibatch): gridless, everything
        # (weights ~72 KiB + activations <0.5 MiB) resident in VMEM.
        q_pad = pl.pallas_call(
            kernel,
            out_shape=out_shape,
            in_specs=[pl.BlockSpec(memory_space=pltpu.MemorySpace.VMEM)] * 7,
            out_specs=pl.BlockSpec(memory_space=pltpu.MemorySpace.VMEM),
            cost_estimate=cost,
        )(x_flat, w1, b1, w2, b2, w3, b3)
    else:
        # Large batch: tile the batch with a pl.cdiv grid (handles ragged B).
        # Block sizing: big enough to amortize the ~0.35us per-step overhead (v5e/v6e),
        # but at least ~8 steps so each v7x TensorCore gets >=2-4 blocks to pipeline.
        batch_block = _round_up(pl.cdiv(B, 8), 16)
        batch_block = max(256, min(2048, batch_block))
        grid = (pl.cdiv(B, batch_block),)
        w_spec = lambda shape: pl.BlockSpec(shape, lambda i: (0, 0))  # weights resident
        q_pad = pl.pallas_call(
            kernel,
            out_shape=out_shape,
            grid_spec=pltpu.PrefetchScalarGridSpec(
                num_scalar_prefetch=0,
                grid=grid,
                in_specs=[pl.BlockSpec((batch_block, S), lambda i: (i, 0)),
                          w_spec(w1.shape), w_spec(b1.shape),
                          w_spec(w2.shape), w_spec(b2.shape),
                          w_spec(w3.shape), w_spec(b3.shape)],
                out_specs=pl.BlockSpec((batch_block, ap), lambda i: (i, 0))),
            compiler_params=pltpu.CompilerParams(
                dimension_semantics=("parallel",)),
            cost_estimate=cost,
        )(x_flat, w1, b1, w2, b2, w3, b3)

    q = q_pad[:, :action_size]
    actions = q_pad[:, ap - 1].astype(jnp.int32)   # argmax stored as exact float in lane ap-1
    return q, actions


def _mirror_reference(x, packed_params, action_size):
    """Pure-JAX reference with the same bf16-operand / f32-accumulate numerics."""
    w1, b1, w2, b2, w3, b3 = packed_params
    xb = x.reshape(x.shape[0], -1).astype(w1.dtype)
    h1 = jnp.maximum(jnp.dot(xb, w1, preferred_element_type=jnp.float32) + b1, 0.0)
    h2 = jnp.maximum(
        jnp.dot(h1.astype(w2.dtype), w2, preferred_element_type=jnp.float32) + b2, 0.0)
    q = jnp.dot(h2.astype(w3.dtype), w3, preferred_element_type=jnp.float32) + b3
    return q[:, :action_size]


if __name__ == "__main__":
    key = jax.random.PRNGKey(0)
    k_params, k_small, k_big, k_ragged = jax.random.split(key, 4)

    state_size = 32
    action_size = 8
    batch = 2

    params = init_ddqn_params(k_params, state_size, action_size)
    packed, A = pack_params(params)

    # --- small batch (gridless path, per-step acting) ---
    x = jax.random.normal(k_small, (batch, state_size), jnp.float32)
    q, actions = ddqn_forward(x, packed, A)
    jax.block_until_ready(q)
    assert q.shape == (batch, action_size)
    assert actions.shape == (batch,)
    ref_q = _mirror_reference(x, packed, A)
    assert jnp.allclose(q, ref_q, atol=1e-4, rtol=1e-4), "q mismatch (small batch)"
    assert jnp.array_equal(actions, jnp.argmax(q, axis=-1)), "fused argmax mismatch"

    # loose check against full-f32 torch-equivalent forward (module semantics)
    w1, b1, w2, b2, w3, b3 = params
    ref_f32 = jnp.maximum(x @ w1 + b1, 0.0)
    ref_f32 = jnp.maximum(ref_f32 @ w2 + b2, 0.0)
    ref_f32 = ref_f32 @ w3 + b3
    assert jnp.allclose(q, ref_f32, atol=2e-2, rtol=2e-2), "semantics drift vs f32 ref"

    # --- large batch, divisible (tiled 'parallel' path; 4 blocks -> 2 per TC on v7x) ---
    x_big = jax.random.normal(k_big, (1024, state_size), jnp.float32)
    q_big, act_big = ddqn_forward(x_big, packed, A)
    jax.block_until_ready(q_big)
    ref_big = _mirror_reference(x_big, packed, A)
    assert q_big.shape == (1024, action_size)
    assert jnp.allclose(q_big, ref_big, atol=1e-4, rtol=1e-4), "q mismatch (big batch)"
    assert jnp.array_equal(act_big, jnp.argmax(q_big, axis=-1)), "argmax mismatch (big)"

    # --- ragged large batch (pl.cdiv grid with a boundary block) ---
    x_rag = jax.random.normal(k_ragged, (777, state_size), jnp.float32)
    q_rag, act_rag = ddqn_forward(x_rag, packed, A)
    jax.block_until_ready(q_rag)
    ref_rag = _mirror_reference(x_rag, packed, A)
    assert q_rag.shape == (777, action_size)
    assert jnp.allclose(q_rag, ref_rag, atol=1e-4, rtol=1e-4), "q mismatch (ragged batch)"
    assert jnp.array_equal(act_rag, jnp.argmax(q_rag, axis=-1)), "argmax mismatch (ragged)"

    print("KERNEL_OK")
</pallas_src>

<mosaic_0001>
module attributes {stable_mosaic.version = 11 : i64} {
  func.func @ddqn_mlp_kernel(%arg0: memref<2x32xf32, #tpu.memory_space<vmem>>, %arg1: memref<32x128xbf16, #tpu.memory_space<vmem>>, %arg2: memref<1x128xf32, #tpu.memory_space<vmem>>, %arg3: memref<128x128xbf16, #tpu.memory_space<vmem>>, %arg4: memref<1x128xf32, #tpu.memory_space<vmem>>, %arg5: memref<128x128xbf16, #tpu.memory_space<vmem>>, %arg6: memref<1x128xf32, #tpu.memory_space<vmem>>, %arg7: memref<2x128xf32, #tpu.memory_space<vmem>>) attributes {dimension_semantics = [], scalar_prefetch = 0 : i64, scratch_operands = 0 : i64, tpu.core_type = #tpu.core_type<tc>} {
    %c0 = arith.constant 0 : index
    %c0_0 = arith.constant 0 : index
    %0 = vector.load %arg0[%c0, %c0_0] : memref<2x32xf32, #tpu.memory_space<vmem>>, vector<2x32xf32>
    %1 = arith.truncf %0 : vector<2x32xf32> to vector<2x32xbf16>
    %c0_1 = arith.constant 0 : index
    %c0_2 = arith.constant 0 : index
    %2 = vector.load %arg1[%c0_1, %c0_2] : memref<32x128xbf16, #tpu.memory_space<vmem>>, vector<32x128xbf16>
    %cst = arith.constant dense<0.000000e+00> : vector<2x128xf32>
    %3 = tpu.matmul %1, %2, %cst {dimension_numbers = #tpu.dot_dimension_numbers<[1], [0], [0], [1], [0, 0, 1, 1], [], []>} : vector<2x32xbf16>, vector<32x128xbf16>, vector<2x128xf32> -> vector<2x128xf32>
    %c0_3 = arith.constant 0 : index
    %c0_4 = arith.constant 0 : index
    %4 = vector.load %arg2[%c0_3, %c0_4] : memref<1x128xf32, #tpu.memory_space<vmem>>, vector<1x128xf32>
    %5 = vector.broadcast %4 : vector<1x128xf32> to vector<2x128xf32>
    %6 = arith.addf %3, %5 : vector<2x128xf32>
    %cst_5 = arith.constant 0.000000e+00 : f32
    %7 = vector.broadcast %cst_5 : f32 to vector<2x128xf32>
    %8 = arith.maximumf %6, %7 : vector<2x128xf32>
    %9 = arith.truncf %8 : vector<2x128xf32> to vector<2x128xbf16>
    %c0_6 = arith.constant 0 : index
    %c0_7 = arith.constant 0 : index
    %10 = vector.load %arg3[%c0_6, %c0_7] : memref<128x128xbf16, #tpu.memory_space<vmem>>, vector<128x128xbf16>
    %cst_8 = arith.constant dense<0.000000e+00> : vector<2x128xf32>
    %11 = tpu.matmul %9, %10, %cst_8 {dimension_numbers = #tpu.dot_dimension_numbers<[1], [0], [0], [1], [0, 0, 1, 1], [], []>} : vector<2x128xbf16>, vector<128x128xbf16>, vector<2x128xf32> -> vector<2x128xf32>
    %c0_9 = arith.constant 0 : index
    %c0_10 = arith.constant 0 : index
    %12 = vector.load %arg4[%c0_9, %c0_10] : memref<1x128xf32, #tpu.memory_space<vmem>>, vector<1x128xf32>
    %13 = vector.broadcast %12 : vector<1x128xf32> to vector<2x128xf32>
    %14 = arith.addf %11, %13 : vector<2x128xf32>
    %cst_11 = arith.constant 0.000000e+00 : f32
    %15 = vector.broadcast %cst_11 : f32 to vector<2x128xf32>
    %16 = arith.maximumf %14, %15 : vector<2x128xf32>
    %17 = arith.truncf %16 : vector<2x128xf32> to vector<2x128xbf16>
    %c0_12 = arith.constant 0 : index
    %c0_13 = arith.constant 0 : index
    %18 = vector.load %arg5[%c0_12, %c0_13] : memref<128x128xbf16, #tpu.memory_space<vmem>>, vector<128x128xbf16>
    %cst_14 = arith.constant dense<0.000000e+00> : vector<2x128xf32>
    %19 = tpu.matmul %17, %18, %cst_14 {dimension_numbers = #tpu.dot_dimension_numbers<[1], [0], [0], [1], [0, 0, 1, 1], [], []>} : vector<2x128xbf16>, vector<128x128xbf16>, vector<2x128xf32> -> vector<2x128xf32>
    %c0_15 = arith.constant 0 : index
    %c0_16 = arith.constant 0 : index
    %20 = vector.load %arg6[%c0_15, %c0_16] : memref<1x128xf32, #tpu.memory_space<vmem>>, vector<1x128xf32>
    %21 = vector.broadcast %20 : vector<1x128xf32> to vector<2x128xf32>
    %22 = arith.addf %19, %21 : vector<2x128xf32>
    %23 = tpu.iota {dimensions = array<i32: 1>} : vector<2x128xi32>
    %c8_i32 = arith.constant 8 : i32
    %24 = vector.broadcast %c8_i32 : i32 to vector<2x128xi32>
    %25 = arith.cmpi slt, %23, %24 : vector<2x128xi32>
    %cst_17 = arith.constant 0xFF800000 : f32
    %26 = vector.broadcast %cst_17 : f32 to vector<2x128xf32>
    %27 = arith.select %25, %22, %26 : vector<2x128xi1>, vector<2x128xf32>
    %cst_18 = arith.constant dense<0xFF800000> : vector<2xf32>
    %28 = vector.multi_reduction <maximumf>, %27, %cst_18 [1] : vector<2x128xf32> to vector<2xf32>
    %29 = vector.shape_cast %28 : vector<2xf32> to vector<2x1xf32>
    %30 = vector.broadcast %29 : vector<2x1xf32> to vector<2x128xf32>
    %31 = arith.cmpf oeq, %27, %30 : vector<2x128xf32>
    %c128_i32 = arith.constant 128 : i32
    %32 = vector.broadcast %c128_i32 : i32 to vector<2x128xi32>
    %33 = arith.select %31, %23, %32 : vector<2x128xi1>, vector<2x128xi32>
    %cst_19 = arith.constant dense<2147483647> : vector<2xi32>
    %34 = vector.multi_reduction <minsi>, %33, %cst_19 [1] : vector<2x128xi32> to vector<2xi32>
    %35 = vector.shape_cast %34 : vector<2xi32> to vector<2x1xi32>
    %36 = arith.sitofp %35 : vector<2x1xi32> to vector<2x1xf32>
    %c127_i32 = arith.constant 127 : i32
    %37 = vector.broadcast %c127_i32 : i32 to vector<2x128xi32>
    %38 = arith.cmpi eq, %23, %37 : vector<2x128xi32>
    %39 = vector.shape_cast %36 : vector<2x1xf32> to vector<2x1xf32>
    %40 = vector.broadcast %39 : vector<2x1xf32> to vector<2x128xf32>
    %41 = arith.select %38, %40, %22 : vector<2x128xi1>, vector<2x128xf32>
    %c0_20 = arith.constant 0 : index
    %c0_21 = arith.constant 0 : index
    %42 = vector.load %arg7[%c0_20, %c0_21] : memref<2x128xf32, #tpu.memory_space<vmem>>, vector<2x128xf32>
    tpu.vector_store %arg7[%c0_20, %c0_21], %41 {strides = array<i32>} : memref<2x128xf32, #tpu.memory_space<vmem>>, vector<2x128xf32>,
    return
  }
}

</mosaic_0001>

<llo_original>
// kernel: tpu_custom_call.1
$region0: #{tpu_custom_call.1}
  #allocation0 [shape = 'u32[]', space=smem, size = 0x4, offset = 0x4, fixed_abs, tag = 'smem constant byte address 0x4 - core index']
  #allocation1 [shape = 'u32[144,128]{1,0:T(1,128)}', space=vmem, size = 0x12000, scoped, tag = 'internal scratch']
  %s0 = inlined_call_operand.hbm [shape: f32[2,32], index: 0, kind: input, shape index: {}]
  %s1 = inlined_call_operand.hbm [shape: bf16[32,128], index: 1, kind: input, shape index: {}]
  %s2 = inlined_call_operand.vmem [shape: f32[1,128], index: 2, kind: input, shape index: {}]
  %s3 = inlined_call_operand.hbm [shape: bf16[128,128], index: 3, kind: input, shape index: {}]
  %s4 = inlined_call_operand.vmem [shape: f32[1,128], index: 4, kind: input, shape index: {}]
  %s5 = inlined_call_operand.hbm [shape: bf16[128,128], index: 5, kind: input, shape index: {}]
  %s6 = inlined_call_operand.vmem [shape: f32[1,128], index: 6, kind: input, shape index: {}]
  %s7 = inlined_call_operand.hbm [shape: f32[2,128], index: 7, kind: output, shape index: {}]
  %s8 = sld [smem:[#allocation0]]
  $region54: #{tpu_custom_call.1} parent=0
    _
  %s10 = ssub.s32 1, %s8
  %s11 = scalar_select 0, %s10, %s8
  $region1: #{tpu_custom_call.1} parent=0
    #allocation2 [shape = 'u8[1024]{0}', space=vmem, size = 0x400, scoped, tag = 'input window, operand 0, single buffered']
    #allocation3 [shape = 's32[1]{0}', space=sflag, size = 0x4, scoped, tag = 'scoped memory for tpu_custom_call.1']
    #allocation4 [shape = 's32[1]{0}', space=sflag, size = 0x4, scoped, tag = 'scoped memory for tpu_custom_call.1']
    #allocation5 [shape = 'u8[8192]{0}', space=vmem, size = 0x2000, scoped, tag = 'input window, operand 1, single buffered']
    #allocation6 [shape = 's32[1]{0}', space=sflag, size = 0x4, scoped, tag = 'scoped memory for tpu_custom_call.1']
    #allocation7 [shape = 'u8[32768]{0}', space=vmem, size = 0x8000, scoped, tag = 'input window, operand 3, single buffered']
    #allocation8 [shape = 'u8[32768]{0}', space=vmem, size = 0x8000, scoped, tag = 'input window, operand 5, single buffered']
    #allocation9 [shape = 's32[1]{0}', space=sflag, size = 0x4, scoped, tag = 'scoped memory for tpu_custom_call.1']
    #allocation10 [shape = 'u8[1024]{0}', space=vmem, size = 0x400, scoped, tag = 'output window, operand 0, single buffered']
    %12 = vsyncpa [#allocation3], 0
    %13 = vsyncpa [#allocation6], 0
    %14 = vsyncpa [#allocation9], 0
    %15 = vsyncpa [#allocation4], 0
    // Predicated region
    $region2: #{tpu_custom_call.1} parent=1 // pred_check
      _
    $region3: #{tpu_custom_call.1} parent=1 // pred_check_branch
      %17 = sbr.rel (0) target = $region5
    $region4: #{tpu_custom_call.1} parent=1 // pred_region
      %s19 = ssub.s32 32, 32
      %20 = vsyncadd [#allocation3], %s19
      %s22 = sshll.u32 [#allocation2], 4
      %s23 = int_to_ptr.vmem [resolvable:$true] %s22
      %25 = dma.hbm_to_vmem [thread:$0]  %s0, 32, %s23, [#allocation3]
    $region5: #{tpu_custom_call.1} parent=1 // pred_fallthru
      _
    // Predicated region
    $region6: #{tpu_custom_call.1} parent=1 // pred_check
      _
    $region7: #{tpu_custom_call.1} parent=1 // pred_check_branch
      %27 = sbr.rel (0) target = $region9
    $region8: #{tpu_custom_call.1} parent=1 // pred_region
      %s29 = ssub.s32 256, 256
      %30 = vsyncadd [#allocation6], %s29
      %s31 = sshll.u32 [#allocation5], 4
      %s32 = int_to_ptr.vmem [resolvable:$true] %s31
      %37 = dma.hbm_to_vmem [thread:$0]  %s1, 256, %s32, [#allocation6], 64, 64, 4
    $region9: #{tpu_custom_call.1} parent=1 // pred_fallthru
      _
    // Predicated region
    $region10: #{tpu_custom_call.1} parent=1 // pred_check
      _
    $region11: #{tpu_custom_call.1} parent=1 // pred_check_branch
      %39 = sbr.rel (0) target = $region13
    $region12: #{tpu_custom_call.1} parent=1 // pred_region
      _
    $region13: #{tpu_custom_call.1} parent=1 // pred_fallthru
      _
    // Predicated region
    $region14: #{tpu_custom_call.1} parent=1 // pred_check
      _
    $region15: #{tpu_custom_call.1} parent=1 // pred_check_branch
      %41 = sbr.rel (0) target = $region17
    $region16: #{tpu_custom_call.1} parent=1 // pred_region
      %s43 = ssub.s32 1024, 1024
      %44 = vsyncadd [#allocation6], %s43
      %s45 = sshll.u32 [#allocation7], 4
      %s46 = int_to_ptr.vmem [resolvable:$true] %s45
      %51 = dma.hbm_to_vmem [thread:$0]  %s3, 1024, %s46, [#allocation6], 64, 64, 4
    $region17: #{tpu_custom_call.1} parent=1 // pred_fallthru
      _
    // Predicated region
    $region18: #{tpu_custom_call.1} parent=1 // pred_check
      _
    $region19: #{tpu_custom_call.1} parent=1 // pred_check_branch
      %53 = sbr.rel (0) target = $region21
    $region20: #{tpu_custom_call.1} parent=1 // pred_region
      _
    $region21: #{tpu_custom_call.1} parent=1 // pred_fallthru
      _
    // Predicated region
    $region22: #{tpu_custom_call.1} parent=1 // pred_check
      _
    $region23: #{tpu_custom_call.1} parent=1 // pred_check_branch
      %55 = sbr.rel (0) target = $region25
    $region24: #{tpu_custom_call.1} parent=1 // pred_region
      %s57 = ssub.s32 1024, 1024
      %58 = vsyncadd [#allocation9], %s57
      %s59 = sshll.u32 [#allocation8], 4
      %s60 = int_to_ptr.vmem [resolvable:$true] %s59
      %65 = dma.hbm_to_vmem [thread:$0]  %s5, 1024, %s60, [#allocation9], 64, 64, 4
    $region25: #{tpu_custom_call.1} parent=1 // pred_fallthru
      _
    // Predicated region
    $region26: #{tpu_custom_call.1} parent=1 // pred_check
      _
    $region27: #{tpu_custom_call.1} parent=1 // pred_check_branch
      %67 = sbr.rel (0) target = $region29
    $region28: #{tpu_custom_call.1} parent=1 // pred_region
      _
    $region29: #{tpu_custom_call.1} parent=1 // pred_fallthru
      _
    // Predicated region
    $region30: #{tpu_custom_call.1} parent=1 // pred_check
      _
    $region31: #{tpu_custom_call.1} parent=1 // pred_check_branch
      %69 = sbr.rel (0) target = $region33
    $region32: #{tpu_custom_call.1} parent=1 // pred_region
      %70 = dma.done [#allocation3], 32
    $region33: #{tpu_custom_call.1} parent=1 // pred_fallthru
      _
    // Predicated region
    $region34: #{tpu_custom_call.1} parent=1 // pred_check
      _
    $region35: #{tpu_custom_call.1} parent=1 // pred_check_branch
      %72 = sbr.rel (0) target = $region37
    $region36: #{tpu_custom_call.1} parent=1 // pred_region
      %73 = dma.done [#allocation6], 256
    $region37: #{tpu_custom_call.1} parent=1 // pred_fallthru
      _
    // Predicated region
    $region38: #{tpu_custom_call.1} parent=1 // pred_check
      _
    $region39: #{tpu_custom_call.1} parent=1 // pred_check_branch
      %75 = sbr.rel (0) target = $region41
    $region40: #{tpu_custom_call.1} parent=1 // pred_region
      %76 = dma.done [#allocation6], 1024
    $region41: #{tpu_custom_call.1} parent=1 // pred_fallthru
      _
    // Predicated region
    $region42: #{tpu_custom_call.1} parent=1 // pred_check
      _
    $region43: #{tpu_custom_call.1} parent=1 // pred_check_branch
      %78 = sbr.rel (0) target = $region45
    $region44: #{tpu_custom_call.1} parent=1 // pred_region
      %79 = dma.done [#allocation9], 1024
    $region45: #{tpu_custom_call.1} parent=1 // pred_fallthru
      _
    %v81 = vld [vmem:[#allocation2] sm:$0x3]
    %v82 = vpack.c.bf16 %v81, %v81
    %v83 = vld [vmem:[#allocation5] sm:$0xf]
    %v84 = vld [vmem:[#allocation5 + $0x4] sm:$0xf]
    %v85 = vld [vmem:[#allocation5 + $0x8] sm:$0xf]
    %v86 = vld [vmem:[#allocation5 + $0xc] sm:$0xf]
    %v87 = vld [vmem:[%s2] sm:$0x1]
    %v89 = vlaneseq
    %v90 = vshrl.u32 %v89, 7
    %v91 = vsub.s32 0, %v90
    %v92 = vrot.slane %v87, %v91
    %v98 = vunpack.c.l.b16 %v83
    %v99 = vunpack.c.l.b16 %v84
    %v100 = vunpack.c.l.b16 %v85
    %v101 = vunpack.c.l.b16 %v86
    %v102 = vpack.c.b16 %v99, %v98
    %v103 = vpack.c.b16 %v101, %v100
    %vm106 = vcmask 261120
    %v108 = vsel %vm106, %v82, 0
    %110 = vmatprep.subr.bf16.mxu0 0
    %111 = vmatpush1.bf16.msra.mxu0 %v102
    %112 = vmatprep.subr.bf16.mxu0 0
    %113 = vmatpush1.bf16.msra.mxu0 %v103
    %114 = vmatprep.subr.bf16.mxu0 0
    %115 = vmatpush1.bf16.msra.mxu0 0
    %116 = vmatprep.subr.bf16.mxu0 0
    %117 = vmatpush1.bf16.msra.mxu0 0
    %118 = vmatprep.subr.bf16.mxu0 0
    %119 = vmatpush1.bf16.msra.mxu0 0
    %120 = vmatprep.subr.bf16.mxu0 0
    %121 = vmatpush1.bf16.msra.mxu0 0
    %122 = vmatprep.subr.bf16.mxu0 0
    %123 = vmatpush1.bf16.msra.mxu0 0
    %124 = vmatprep.subr.bf16.mxu0 0
    %125 = vmatpush1.bf16.msra.mxu0 0
    %126 = vmatprep.subr.bf16.mxu0 0
    %127 = vmatpush1.bf16.msra.mxu0 0
    %128 = vmatprep.subr.bf16.mxu0 0
    %129 = vmatpush1.bf16.msra.mxu0 0
    %130 = vmatprep.subr.bf16.mxu0 0
    %131 = vmatpush1.bf16.msra.mxu0 0
    %132 = vmatprep.subr.bf16.mxu0 0
    %133 = vmatpush1.bf16.msra.mxu0 0
    %134 = vmatprep.subr.bf16.mxu0 0
    %135 = vmatpush1.bf16.msra.mxu0 0
    %136 = vmatprep.subr.bf16.mxu0 0
    %137 = vmatpush1.bf16.msra.mxu0 0
    %138 = vmatprep.subr.bf16.mxu0 0
    %139 = vmatpush1.bf16.msra.mxu0 0
    %140 = vmatprep.subr.bf16.mxu0 0
    %141 = vmatpush1.bf16.msra.mxu0 0
    %142 = vmatprep.mubr.bf16.mxu0 0
    %143 = vmatmul.mubr.bf16.gmra.mrb[0].mxu0 %v108
    %v144 = vpop.f32.mrb[0].mxu0
    %v145 = vadd.f32 %v92, %v144
    %v146 = vpop.f32.mrb[0].mxu0
    %v147 = vpop.f32.mrb[0].mxu0
    %v148 = vpop.f32.mrb[0].mxu0
    %149 = vdwg.mxu0
    %v150 = vmax.f32 %v145, 0.0
    %v151 = vpack.c.bf16 %v150, %v150
    %v152 = vld [vmem:[#allocation7] sm:$0xf]
    %v153 = vld [vmem:[#allocation7 + $0x4] sm:$0xf]
    %v154 = vld [vmem:[#allocation7 + $0x8] sm:$0xf]
    %v155 = vld [vmem:[#allocation7 + $0xc] sm:$0xf]
    %v156 = vld [vmem:[#allocation7 + $0x10] sm:$0xf]
    %v157 = vld [vmem:[#allocation7 + $0x14] sm:$0xf]
    %v158 = vld [vmem:[#allocation7 + $0x18] sm:$0xf]
    %v159 = vld [vmem:[#allocation7 + $0x1c] sm:$0xf]
    %v160 = vld [vmem:[#allocation7 + $0x20] sm:$0xf]
    %v161 = vld [vmem:[#allocation7 + $0x24] sm:$0xf]
    %v162 = vld [vmem:[#allocation7 + $0x28] sm:$0xf]
    %v163 = vld [vmem:[#allocation7 + $0x2c] sm:$0xf]
    %v164 = vld [vmem:[#allocation7 + $0x30] sm:$0xf]
    %v165 = vld [vmem:[#allocation7 + $0x34] sm:$0xf]
    %v166 = vld [vmem:[#allocation7 + $0x38] sm:$0xf]
    %v167 = vld [vmem:[#allocation7 + $0x3c] sm:$0xf]
    %v168 = vld [vmem:[%s4] sm:$0x1]
    %v170 = vlaneseq
    %v171 = vshrl.u32 %v170, 7
    %v172 = vsub.s32 0, %v171
    %v173 = vrot.slane %v168, %v172
    %v191 = vunpack.c.l.b16 %v152
    %v192 = vunpack.c.l.b16 %v153
    %v193 = vunpack.c.l.b16 %v154
    %v194 = vunpack.c.l.b16 %v155
    %v195 = vunpack.c.l.b16 %v156
    %v196 = vunpack.c.l.b16 %v157
    %v197 = vunpack.c.l.b16 %v158
    %v198 = vunpack.c.l.b16 %v159
    %v199 = vunpack.c.l.b16 %v160
    %v200 = vunpack.c.l.b16 %v161
    %v201 = vunpack.c.l.b16 %v162
    %v202 = vunpack.c.l.b16 %v163
    %v203 = vunpack.c.l.b16 %v164
    %v204 = vunpack.c.l.b16 %v165
    %v205 = vunpack.c.l.b16 %v166
    %v206 = vunpack.c.l.b16 %v167
    %v207 = vpack.c.b16 %v192, %v191
    %v208 = vpack.c.b16 %v194, %v193
    %v209 = vpack.c.b16 %v196, %v195
    %v210 = vpack.c.b16 %v198, %v197
    %v211 = vpack.c.b16 %v200, %v199
    %v212 = vpack.c.b16 %v202, %v201
    %v213 = vpack.c.b16 %v204, %v203
    %v214 = vpack.c.b16 %v206, %v205
    %223 = vmatprep.subr.bf16.mxu0 0
    %224 = vmatpush1.bf16.msra.mxu0 %v207
    %225 = vmatprep.subr.bf16.mxu0 0
    %226 = vmatpush1.bf16.msra.mxu0 %v208
    %227 = vmatprep.subr.bf16.mxu0 0
    %228 = vmatpush1.bf16.msra.mxu0 %v209
    %229 = vmatprep.subr.bf16.mxu0 0
    %230 = vmatpush1.bf16.msra.mxu0 %v210
    %231 = vmatprep.subr.bf16.mxu0 0
    %232 = vmatpush1.bf16.msra.mxu0 %v211
    %233 = vmatprep.subr.bf16.mxu0 0
    %234 = vmatpush1.bf16.msra.mxu0 %v212
    %235 = vmatprep.subr.bf16.mxu0 0
    %236 = vmatpush1.bf16.msra.mxu0 %v213
    %237 = vmatprep.subr.bf16.mxu0 0
    %238 = vmatpush1.bf16.msra.mxu0 %v214
    %239 = vmatprep.subr.bf16.mxu0 0
    %240 = vmatpush1.bf16.msra.mxu0 0
    %241 = vmatprep.subr.bf16.mxu0 0
    %242 = vmatpush1.bf16.msra.mxu0 0
    %243 = vmatprep.subr.bf16.mxu0 0
    %244 = vmatpush1.bf16.msra.mxu0 0
    %245 = vmatprep.subr.bf16.mxu0 0
    %246 = vmatpush1.bf16.msra.mxu0 0
    %247 = vmatprep.subr.bf16.mxu0 0
    %248 = vmatpush1.bf16.msra.mxu0 0
    %249 = vmatprep.subr.bf16.mxu0 0
    %250 = vmatpush1.bf16.msra.mxu0 0
    %251 = vmatprep.subr.bf16.mxu0 0
    %252 = vmatpush1.bf16.msra.mxu0 0
    %253 = vmatprep.subr.bf16.mxu0 0
    %254 = vmatpush1.bf16.msra.mxu0 0
    %255 = vmatprep.mubr.bf16.mxu0 0
    %256 = vmatmul.mubr.bf16.gmra.mrb[0].mxu0 %v151
    %v257 = vpop.f32.mrb[0].mxu0
    %v258 = vadd.f32 %v173, %v257
    %v259 = vpop.f32.mrb[0].mxu0
    %v260 = vpop.f32.mrb[0].mxu0
    %v261 = vpop.f32.mrb[0].mxu0
    %262 = vdwg.mxu0
    %v263 = vmax.f32 %v258, 0.0
    %v264 = vpack.c.bf16 %v263, %v263
    %v265 = vld [vmem:[#allocation8] sm:$0xf]
    %v266 = vld [vmem:[#allocation8 + $0x4] sm:$0xf]
    %v267 = vld [vmem:[#allocation8 + $0x8] sm:$0xf]
    %v268 = vld [vmem:[#allocation8 + $0xc] sm:$0xf]
    %v269 = vld [vmem:[#allocation8 + $0x10] sm:$0xf]
    %v270 = vld [vmem:[#allocation8 + $0x14] sm:$0xf]
    %v271 = vld [vmem:[#allocation8 + $0x18] sm:$0xf]
    %v272 = vld [vmem:[#allocation8 + $0x1c] sm:$0xf]
    %v273 = vld [vmem:[#allocation8 + $0x20] sm:$0xf]
    %v274 = vld [vmem:[#allocation8 + $0x24] sm:$0xf]
    %v275 = vld [vmem:[#allocation8 + $0x28] sm:$0xf]
    %v276 = vld [vmem:[#allocation8 + $0x2c] sm:$0xf]
    %v277 = vld [vmem:[#allocation8 + $0x30] sm:$0xf]
    %v278 = vld [vmem:[#allocation8 + $0x34] sm:$0xf]
    %v279 = vld [vmem:[#allocation8 + $0x38] sm:$0xf]
    %v280 = vld [vmem:[#allocation8 + $0x3c] sm:$0xf]
    %v281 = vld [vmem:[%s6] sm:$0x1]
    %v283 = vlaneseq
    %v284 = vshrl.u32 %v283, 7
    %v285 = vsub.s32 0, %v284
    %v286 = vrot.slane %v281, %v285
    %v304 = vunpack.c.l.b16 %v265
    %v305 = vunpack.c.l.b16 %v266
    %v306 = vunpack.c.l.b16 %v267
    %v307 = vunpack.c.l.b16 %v268
    %v308 = vunpack.c.l.b16 %v269
    %v309 = vunpack.c.l.b16 %v270
    %v310 = vunpack.c.l.b16 %v271
    %v311 = vunpack.c.l.b16 %v272
    %v312 = vunpack.c.l.b16 %v273
    %v313 = vunpack.c.l.b16 %v274
    %v314 = vunpack.c.l.b16 %v275
    %v315 = vunpack.c.l.b16 %v276
    %v316 = vunpack.c.l.b16 %v277
    %v317 = vunpack.c.l.b16 %v278
    %v318 = vunpack.c.l.b16 %v279
    %v319 = vunpack.c.l.b16 %v280
    %v320 = vpack.c.b16 %v305, %v304
    %v321 = vpack.c.b16 %v307, %v306
    %v322 = vpack.c.b16 %v309, %v308
    %v323 = vpack.c.b16 %v311, %v310
    %v324 = vpack.c.b16 %v313, %v312
    %v325 = vpack.c.b16 %v315, %v314
    %v326 = vpack.c.b16 %v317, %v316
    %v327 = vpack.c.b16 %v319, %v318
    %336 = vmatprep.subr.bf16.mxu0 0
    %337 = vmatpush1.bf16.msra.mxu0 %v320
    %338 = vmatprep.subr.bf16.mxu0 0
    %339 = vmatpush1.bf16.msra.mxu0 %v321
    %340 = vmatprep.subr.bf16.mxu0 0
    %341 = vmatpush1.bf16.msra.mxu0 %v322
    %342 = vmatprep.subr.bf16.mxu0 0
    %343 = vmatpush1.bf16.msra.mxu0 %v323
    %344 = vmatprep.subr.bf16.mxu0 0
    %345 = vmatpush1.bf16.msra.mxu0 %v324
    %346 = vmatprep.subr.bf16.mxu0 0
    %347 = vmatpush1.bf16.msra.mxu0 %v325
    %348 = vmatprep.subr.bf16.mxu0 0
    %349 = vmatpush1.bf16.msra.mxu0 %v326
    %350 = vmatprep.subr.bf16.mxu0 0
    %351 = vmatpush1.bf16.msra.mxu0 %v327
    %352 = vmatprep.subr.bf16.mxu0 0
    %353 = vmatpush1.bf16.msra.mxu0 0
    %354 = vmatprep.subr.bf16.mxu0 0
    %355 = vmatpush1.bf16.msra.mxu0 0
    %356 = vmatprep.subr.bf16.mxu0 0
    %357 = vmatpush1.bf16.msra.mxu0 0
    %358 = vmatprep.subr.bf16.mxu0 0
    %359 = vmatpush1.bf16.msra.mxu0 0
    %360 = vmatprep.subr.bf16.mxu0 0
    %361 = vmatpush1.bf16.msra.mxu0 0
    %362 = vmatprep.subr.bf16.mxu0 0
    %363 = vmatpush1.bf16.msra.mxu0 0
    %364 = vmatprep.subr.bf16.mxu0 0
    %365 = vmatpush1.bf16.msra.mxu0 0
    %366 = vmatprep.subr.bf16.mxu0 0
    %367 = vmatpush1.bf16.msra.mxu0 0
    %368 = vmatprep.mubr.bf16.mxu0 0
    %369 = vmatmul.mubr.bf16.gmra.mrb[0].mxu0 %v264
    %v370 = vpop.f32.mrb[0].mxu0
    %v371 = vadd.f32 %v286, %v370
    %v372 = vpop.f32.mrb[0].mxu0
    %v373 = vpop.f32.mrb[0].mxu0
    %v374 = vpop.f32.mrb[0].mxu0
    %375 = vdwg.mxu0
    %v376 = vlaneseq
    %v377 = vand.u32 %v376, 127
    %vm378 = vcmp.lt.s32.totalorder %v377, 8
    %v379 = vsel %vm378, %v371, -inf
    %vm380 = vcmask 1041408
    %v381 = vsel %vm380, %v379, -inf
    %382 = vmax.xlane.f32.xlu0 %v381
    %v383 = vpop.xlane.xlu0 %382
    %vm384 = vcmp.eq.f32.partialorder %v379, %v383
    %v385 = vsel %vm384, %v377, 128
    %v386 = vsel %vm380, %v385, 2147483647
    %v387 = vand.u32 %v386, 65535
    %v388 = vshra.s32 %v386, 16
    %v389 = vcvt.s32.f32 %v387
    %v390 = vcvt.s32.f32 %v388
    %391 = vmin.xlane.f32.xlu0 %v390
    %v392 = vpop.xlane.xlu0 %391
    %vm393 = vcmp.eq.f32.partialorder %v390, %v392
    %v394 = vsel %vm393, %v389, inf
    %395 = vmin.xlane.f32.xlu0 %v394
    %v396 = vpop.xlane.xlu0 %395
    %v397 = vcvt.f32.s32 %v396
    %v398 = vcvt.f32.s32 %v392
    %v399 = vshll.u32 %v398, 16
    %v400 = vadd.s32 %v399, %v397
    %v401 = vcvt.s32.f32 %v400
    %vm402 = vcmp.eq.s32.totalorder %v377, 127
    %v403 = vsel %vm402, %v401, %v371
    %404 = vst [vmem:[#allocation10] sm:$0x3] %v403
    // Predicated region
    $region46: #{tpu_custom_call.1} parent=1 // pred_check
      _
    $region47: #{tpu_custom_call.1} parent=1 // pred_check_branch
      %406 = sbr.rel (0) target = $region49
    $region48: #{tpu_custom_call.1} parent=1 // pred_region
      %s408 = ssub.s32 32, 32
      %409 = vsyncadd [#allocation4], %s408
      %s411 = sshll.u32 [#allocation10], 4
      %s412 = int_to_ptr.vmem [resolvable:$true] %s411
      %414 = dma.vmem_to_hbm [thread:$0]  %s412, 32, %s7, [#allocation4]
    $region49: #{tpu_custom_call.1} parent=1 // pred_fallthru
      _
    // Predicated region
    $region50: #{tpu_custom_call.1} parent=1 // pred_check
      _
    $region51: #{tpu_custom_call.1} parent=1 // pred_check_branch
      %416 = sbr.rel (0) target = $region53
    $region52: #{tpu_custom_call.1} parent=1 // pred_region
      %417 = dma.done [#allocation4], 32
    $region53: #{tpu_custom_call.1} parent=1 // pred_fallthru
      _
    %418 = vsyncpa [#allocation3], 1
    %419 = vsyncpa [#allocation6], 1
    %420 = vsyncpa [#allocation9], 1
    %421 = vsyncpa [#allocation4], 1

</llo_original>
